<compile_context>
chip_gen: v7x
topology: tpu7x:2x2x1
jax: 0.10.0
libtpu: 0.0.40
codegen_flags: <defaults>
</compile_context>

<pallas_src>
import jax
import jax.numpy as jnp
from jax.experimental import pallas as pl
from jax.experimental.pallas import tpu as pltpu


def _round_up(x, m):
    return ((x + m - 1) // m) * m


def _linear_kernel(w_ref, b_ref, s0_ref, s1_ref, s2_ref, o_ref):
    # Scalars from SMEM: the (1, 3) weight of nn.Linear(3, 1) and its bias.
    w0 = w_ref[0, 0]
    w1 = w_ref[0, 1]
    w2 = w_ref[0, 2]
    bias = b_ref[0]
    # Fused "stack -> linear -> squeeze": weighted sum of the three inputs,
    # accumulated in f32 on the VPU, cast only at the store.
    acc = (s0_ref[...].astype(jnp.float32) * w0
           + s1_ref[...].astype(jnp.float32) * w1
           + s2_ref[...].astype(jnp.float32) * w2
           + bias)
    o_ref[...] = acc.astype(o_ref.dtype)


def linear_forward(seq, seq1, seq2, weight, bias):
    """seq/seq1/seq2: (A, B). weight: (1, 3). bias: (1,). Returns (A, B)."""
    A, B = seq.shape
    dtype = seq.dtype
    itemsize = jnp.dtype(dtype).itemsize

    # dtype-dependent sublane packing: 8 rows for 32-bit, 16 for bf16, 32 for int8/fp8
    sublane = max(8, 32 // itemsize)

    # ~3 MiB per array per tile.  3 inputs + 1 output, double-buffered:
    # 4 x 2 x 3 MiB = 24 MiB of buffers, comfortably inside the 48 MiB scoped
    # VMEM limit set below and v7x's 64 MiB physical VMEM.
    tile_budget = 3 * 1024 * 1024
    total_bytes = A * B * itemsize

    if sublane * B * itemsize <= tile_budget:
        # Full-row (lane-dense) tiles: every DMA is one contiguous slab.
        # Split A into >= 4 balanced steps (clamped by available sublane
        # groups) so the pipeline has depth and v7x's two TCs split evenly.
        TB = B
        max_steps = pl.cdiv(A, sublane)
        n_steps = max(1, min(max(pl.cdiv(total_bytes, tile_budget), 4), max_steps))
        TA = _round_up(pl.cdiv(A, n_steps), sublane)
    else:
        # Extremely wide rows: tile B as well.  A few sublane groups per tile
        # keeps per-step DMA descriptor count low; TB stays a multiple of 128
        # so stores remain unmasked and lane-dense in the interior.
        TA = max(sublane, min(_round_up(A, sublane), 4 * sublane))
        TB = max(128, min(_round_up(B, 128),
                          ((tile_budget // (TA * itemsize)) // 128) * 128))

    grid = (pl.cdiv(A, TA), pl.cdiv(B, TB))
    tile_spec = pl.BlockSpec((TA, TB), lambda i, j: (i, j))

    return pl.pallas_call(
        _linear_kernel,
        out_shape=jax.ShapeDtypeStruct((A, B), dtype),
        grid=grid,
        in_specs=[
            pl.BlockSpec(memory_space=pltpu.SMEM),   # weight (1, 3)
            pl.BlockSpec(memory_space=pltpu.SMEM),   # bias   (1,)
            tile_spec,                               # seq
            tile_spec,                               # seq1
            tile_spec,                               # seq2
        ],
        out_specs=tile_spec,
        compiler_params=pltpu.CompilerParams(
            dimension_semantics=("parallel", "parallel"),
            vmem_limit_bytes=48 * 1024 * 1024,
        ),
        cost_estimate=pl.CostEstimate(
            flops=6 * A * B,
            transcendentals=0,
            bytes_accessed=4 * A * B * itemsize,
        ),
    )(weight.astype(jnp.float32), bias.astype(jnp.float32), seq, seq1, seq2)


if __name__ == "__main__":
    # The module only makes sense with in_dim=3, out_dim=1 (it concatenates
    # three scalars per position and squeezes the output channel).
    in_dim, out_dim = 3, 1

    key = jax.random.PRNGKey(0)
    k_w, k_b = jax.random.split(key, 2)

    # Deterministic nn.Linear-style init: U(-1/sqrt(in_dim), 1/sqrt(in_dim))
    bound = 1.0 / (in_dim ** 0.5)
    weight = jax.random.uniform(k_w, (out_dim, in_dim), jnp.float32, -bound, bound)
    bias = jax.random.uniform(k_b, (out_dim,), jnp.float32, -bound, bound)

    def reference(a, b, c):
        stacked = jnp.stack([a, b, c], axis=2)          # (A, B, 3)
        return (stacked @ weight.T + bias)[..., 0]      # (A, B)

    # Small shapes: one vreg-aligned, one unaligned (exercises ragged boundary
    # blocks with no wrapper pad/slice), one with a multi-step balanced grid.
    for (A, B) in [(8, 128), (300, 517), (1024, 640)]:
        ks = jax.random.split(jax.random.fold_in(key, A * 100003 + B), 3)
        seq = jax.random.normal(ks[0], (A, B), jnp.float32)
        seq1 = jax.random.normal(ks[1], (A, B), jnp.float32)
        seq2 = jax.random.normal(ks[2], (A, B), jnp.float32)

        out = jax.block_until_ready(linear_forward(seq, seq1, seq2, weight, bias))
        ref = reference(seq, seq1, seq2)

        assert out.shape == (A, B)
        assert jnp.allclose(out, ref, atol=1e-5, rtol=1e-5), f"mismatch at {(A, B)}"

    print("KERNEL_OK")
</pallas_src>

<mosaic_0001>
module attributes {stable_mosaic.version = 11 : i64} {
  func.func @_linear_kernel(%arg0: i32, %arg1: i32, %arg2: memref<1x3xf32, #tpu.memory_space<smem>>, %arg3: memref<1xf32, #tpu.memory_space<smem>>, %arg4: memref<8x128xf32, #tpu.memory_space<vmem>>, %arg5: memref<8x128xf32, #tpu.memory_space<vmem>>, %arg6: memref<8x128xf32, #tpu.memory_space<vmem>>, %arg7: memref<8x128xf32, #tpu.memory_space<vmem>>) attributes {dimension_semantics = [#tpu.dimension_semantics<parallel>, #tpu.dimension_semantics<parallel>], iteration_bounds = array<i64: 1, 1>, scalar_prefetch = 0 : i64, scratch_operands = 0 : i64, tpu.core_type = #tpu.core_type<tc>, window_params = [{transform_indices = @transform_0, window_bounds = array<i64: 1, 3>}, {transform_indices = @transform_1, window_bounds = array<i64: 1>}, {transform_indices = @transform_2, window_bounds = array<i64: 8, 128>}, {transform_indices = @transform_3, window_bounds = array<i64: 8, 128>}, {transform_indices = @transform_4, window_bounds = array<i64: 8, 128>}, {transform_indices = @transform_5, window_bounds = array<i64: 8, 128>}]} {
    %c0 = arith.constant 0 : index
    %c0_0 = arith.constant 0 : index
    %0 = memref.load %arg2[%c0, %c0_0] : memref<1x3xf32, #tpu.memory_space<smem>>
    %c0_1 = arith.constant 0 : index
    %c1 = arith.constant 1 : index
    %1 = memref.load %arg2[%c0_1, %c1] : memref<1x3xf32, #tpu.memory_space<smem>>
    %c0_2 = arith.constant 0 : index
    %c2 = arith.constant 2 : index
    %2 = memref.load %arg2[%c0_2, %c2] : memref<1x3xf32, #tpu.memory_space<smem>>
    %c0_3 = arith.constant 0 : index
    %3 = memref.load %arg3[%c0_3] : memref<1xf32, #tpu.memory_space<smem>>
    %c0_4 = arith.constant 0 : index
    %c0_5 = arith.constant 0 : index
    %4 = vector.load %arg4[%c0_4, %c0_5] : memref<8x128xf32, #tpu.memory_space<vmem>>, vector<8x128xf32>
    %5 = vector.broadcast %0 : f32 to vector<8x128xf32>
    %6 = arith.mulf %4, %5 : vector<8x128xf32>
    %c0_6 = arith.constant 0 : index
    %c0_7 = arith.constant 0 : index
    %7 = vector.load %arg5[%c0_6, %c0_7] : memref<8x128xf32, #tpu.memory_space<vmem>>, vector<8x128xf32>
    %8 = vector.broadcast %1 : f32 to vector<8x128xf32>
    %9 = arith.mulf %7, %8 : vector<8x128xf32>
    %10 = arith.addf %6, %9 : vector<8x128xf32>
    %c0_8 = arith.constant 0 : index
    %c0_9 = arith.constant 0 : index
    %11 = vector.load %arg6[%c0_8, %c0_9] : memref<8x128xf32, #tpu.memory_space<vmem>>, vector<8x128xf32>
    %12 = vector.broadcast %2 : f32 to vector<8x128xf32>
    %13 = arith.mulf %11, %12 : vector<8x128xf32>
    %14 = arith.addf %10, %13 : vector<8x128xf32>
    %15 = vector.broadcast %3 : f32 to vector<8x128xf32>
    %16 = arith.addf %14, %15 : vector<8x128xf32>
    %c0_10 = arith.constant 0 : index
    %c0_11 = arith.constant 0 : index
    %17 = vector.load %arg7[%c0_10, %c0_11] : memref<8x128xf32, #tpu.memory_space<vmem>>, vector<8x128xf32>
    tpu.vector_store %arg7[%c0_10, %c0_11], %16 {strides = array<i32>} : memref<8x128xf32, #tpu.memory_space<vmem>>, vector<8x128xf32>,
    return
  }
  func.func @transform_0(%arg0: i32, %arg1: i32) -> (i32, i32) {
    %c0_i32 = arith.constant 0 : i32
    %c0_i32_0 = arith.constant 0 : i32
    %c0_i32_1 = arith.constant 0 : i32
    return %c0_i32, %c0_i32_0 : i32, i32
  }
  func.func @transform_1(%arg0: i32, %arg1: i32) -> i32 {
    %c0_i32 = arith.constant 0 : i32
    %c0_i32_0 = arith.constant 0 : i32
    return %c0_i32 : i32
  }
  func.func @transform_2(%arg0: i32, %arg1: i32) -> (i32, i32) {
    %c0_i32 = arith.constant 0 : i32
    return %arg0, %arg1 : i32, i32
  }
  func.func @transform_3(%arg0: i32, %arg1: i32) -> (i32, i32) {
    %c0_i32 = arith.constant 0 : i32
    return %arg0, %arg1 : i32, i32
  }
  func.func @transform_4(%arg0: i32, %arg1: i32) -> (i32, i32) {
    %c0_i32 = arith.constant 0 : i32
    return %arg0, %arg1 : i32, i32
  }
  func.func @transform_5(%arg0: i32, %arg1: i32) -> (i32, i32) {
    %c0_i32 = arith.constant 0 : i32
    return %arg0, %arg1 : i32, i32
  }
}

</mosaic_0001>

<llo_original>
// kernel: tpu_custom_call.1
$region0: #{tpu_custom_call.1}
  #allocation0 [shape = 'u32[]', space=smem, size = 0x4, offset = 0x4, fixed_abs, tag = 'smem constant byte address 0x4 - core index']
  #allocation1 [shape = 'u32[144,128]{1,0:T(1,128)}', space=vmem, size = 0x12000, scoped, tag = 'internal scratch']
  #allocation2 [shape = 'f32[1]{0:T(128)S(6)}', space=smem, size = 0x200, scoped, tag = 'scoped memory for tpu_custom_call.1']
  %s0 = inlined_call_operand.vmem [shape: f32[1,3], index: 0, kind: input, shape index: {}]
  %s1 = inlined_call_operand.<no memory space> [shape: f32[1], index: 1, kind: input, shape index: {}]
  %s2 = inlined_call_operand.hbm [shape: f32[8,128], index: 2, kind: input, shape index: {}]
  %s3 = inlined_call_operand.vmem [shape: f32[8,128], index: 3, kind: input, shape index: {}]
  %s4 = inlined_call_operand.hbm [shape: f32[8,128], index: 4, kind: input, shape index: {}]
  %s5 = inlined_call_operand.hbm [shape: f32[8,128], index: 5, kind: output, shape index: {}]
  %s6 = sld [smem:[#allocation0]]
  $region42: #{tpu_custom_call.1} parent=0
    _
  %s8 = ssub.s32 1, %s6
  %s9 = scalar_select 0, %s8, %s6
  %10 = sst [smem:[#allocation2]] %s1
  $region1: #{tpu_custom_call.1} parent=0
    #allocation3 [shape = 'u8[512]{0}', space=smem, size = 0x200, scoped, tag = 'input window, operand 0, single buffered']
    #allocation4 [shape = 's32[1]{0}', space=sflag, size = 0x4, scoped, tag = 'scoped memory for tpu_custom_call.1']
    #allocation5 [shape = 's32[1]{0}', space=sflag, size = 0x4, scoped, tag = 'scoped memory for tpu_custom_call.1']
    #allocation6 [shape = 's32[1]{0}', space=sflag, size = 0x4, scoped, tag = 'scoped memory for tpu_custom_call.1']
    #allocation7 [shape = 'u8[4096]{0}', space=vmem, size = 0x1000, scoped, tag = 'input window, operand 2, single buffered']
    #allocation8 [shape = 'u8[4096]{0}', space=vmem, size = 0x1000, scoped, tag = 'input window, operand 4, single buffered']
    #allocation9 [shape = 's32[1]{0}', space=sflag, size = 0x4, scoped, tag = 'scoped memory for tpu_custom_call.1']
    #allocation10 [shape = 'u8[4096]{0}', space=vmem, size = 0x1000, scoped, tag = 'output window, operand 0, single buffered']
    %11 = vsyncpa [#allocation6], 0
    %12 = vsyncpa [#allocation4], 0
    %13 = vsyncpa [#allocation9], 0
    %14 = vsyncpa [#allocation5], 0
    // Predicated region
    $region2: #{tpu_custom_call.1} parent=1 // pred_check
      _
    $region3: #{tpu_custom_call.1} parent=1 // pred_check_branch
      %16 = sbr.rel (0) target = $region5
    $region4: #{tpu_custom_call.1} parent=1 // pred_region
      %s18 = ssub.s32 16, 16
      %19 = vsyncadd [#allocation6], %s18
      %s21 = sshll.u32 %s0, 4
      %s22 = int_to_ptr.vmem [resolvable:$true] %s21
      %24 = dma.vmem_to_smem %s22, 16, [#allocation3], [#allocation6]
    $region5: #{tpu_custom_call.1} parent=1 // pred_fallthru
      _
    // Predicated region
    $region6: #{tpu_custom_call.1} parent=1 // pred_check
      _
    $region7: #{tpu_custom_call.1} parent=1 // pred_check_branch
      %26 = sbr.rel (0) target = $region9
    $region8: #{tpu_custom_call.1} parent=1 // pred_region
      _
    $region9: #{tpu_custom_call.1} parent=1 // pred_fallthru
      _
    // Predicated region
    $region10: #{tpu_custom_call.1} parent=1 // pred_check
      _
    $region11: #{tpu_custom_call.1} parent=1 // pred_check_branch
      %28 = sbr.rel (0) target = $region13
    $region12: #{tpu_custom_call.1} parent=1 // pred_region
      %s30 = ssub.s32 128, 128
      %31 = vsyncadd [#allocation4], %s30
      %s33 = sshll.u32 [#allocation7], 4
      %s34 = int_to_ptr.vmem [resolvable:$true] %s33
      %36 = dma.hbm_to_vmem [thread:$0]  %s2, 128, %s34, [#allocation4]
    $region13: #{tpu_custom_call.1} parent=1 // pred_fallthru
      _
    // Predicated region
    $region14: #{tpu_custom_call.1} parent=1 // pred_check
      _
    $region15: #{tpu_custom_call.1} parent=1 // pred_check_branch
      %38 = sbr.rel (0) target = $region17
    $region16: #{tpu_custom_call.1} parent=1 // pred_region
      _
    $region17: #{tpu_custom_call.1} parent=1 // pred_fallthru
      _
    // Predicated region
    $region18: #{tpu_custom_call.1} parent=1 // pred_check
      _
    $region19: #{tpu_custom_call.1} parent=1 // pred_check_branch
      %40 = sbr.rel (0) target = $region21
    $region20: #{tpu_custom_call.1} parent=1 // pred_region
      %s42 = ssub.s32 128, 128
      %43 = vsyncadd [#allocation9], %s42
      %s45 = sshll.u32 [#allocation8], 4
      %s46 = int_to_ptr.vmem [resolvable:$true] %s45
      %48 = dma.hbm_to_vmem [thread:$0]  %s4, 128, %s46, [#allocation9]
    $region21: #{tpu_custom_call.1} parent=1 // pred_fallthru
      _
    // Predicated region
    $region22: #{tpu_custom_call.1} parent=1 // pred_check
      _
    $region23: #{tpu_custom_call.1} parent=1 // pred_check_branch
      %50 = sbr.rel (0) target = $region25
    $region24: #{tpu_custom_call.1} parent=1 // pred_region
      %51 = dma.done [#allocation6], 16
    $region25: #{tpu_custom_call.1} parent=1 // pred_fallthru
      _
    // Predicated region
    $region26: #{tpu_custom_call.1} parent=1 // pred_check
      _
    $region27: #{tpu_custom_call.1} parent=1 // pred_check_branch
      %53 = sbr.rel (0) target = $region29
    $region28: #{tpu_custom_call.1} parent=1 // pred_region
      %54 = dma.done [#allocation4], 128
    $region29: #{tpu_custom_call.1} parent=1 // pred_fallthru
      _
    // Predicated region
    $region30: #{tpu_custom_call.1} parent=1 // pred_check
      _
    $region31: #{tpu_custom_call.1} parent=1 // pred_check_branch
      %56 = sbr.rel (0) target = $region33
    $region32: #{tpu_custom_call.1} parent=1 // pred_region
      %57 = dma.done [#allocation9], 128
    $region33: #{tpu_custom_call.1} parent=1 // pred_fallthru
      _
    %58 = sfence
    %s59 = sld [smem:[#allocation3]]
    %s60 = sld [smem:[#allocation3 + $0x1]]
    %s61 = sld [smem:[#allocation3 + $0x2]]
    %s62 = sld [smem:[#allocation2]]
    %v63 = vld [vmem:[#allocation7] sm:$0xff]
    %v64 = vstv %s59
    %v65 = vmul.f32 %v63, %v64
    %v66 = vld [vmem:[%s3] sm:$0xff]
    %v67 = vstv %s60
    %v68 = vmul.f32 %v66, %v67
    %v69 = vadd.f32 %v65, %v68
    %v70 = vld [vmem:[#allocation8] sm:$0xff]
    %v71 = vstv %s61
    %v72 = vmul.f32 %v70, %v71
    %v73 = vadd.f32 %v69, %v72
    %v74 = vstv %s62
    %v75 = vadd.f32 %v73, %v74
    %76 = vst [vmem:[#allocation10] sm:$0xff] %v75
    // Predicated region
    $region34: #{tpu_custom_call.1} parent=1 // pred_check
      _
    $region35: #{tpu_custom_call.1} parent=1 // pred_check_branch
      %78 = sbr.rel (0) target = $region37
    $region36: #{tpu_custom_call.1} parent=1 // pred_region
      %s80 = ssub.s32 128, 128
      %81 = vsyncadd [#allocation5], %s80
      %s83 = sshll.u32 [#allocation10], 4
      %s84 = int_to_ptr.vmem [resolvable:$true] %s83
      %86 = dma.vmem_to_hbm [thread:$0]  %s84, 128, %s5, [#allocation5]
    $region37: #{tpu_custom_call.1} parent=1 // pred_fallthru
      _
    // Predicated region
    $region38: #{tpu_custom_call.1} parent=1 // pred_check
      _
    $region39: #{tpu_custom_call.1} parent=1 // pred_check_branch
      %88 = sbr.rel (0) target = $region41
    $region40: #{tpu_custom_call.1} parent=1 // pred_region
      %89 = dma.done [#allocation5], 128
    $region41: #{tpu_custom_call.1} parent=1 // pred_fallthru
      _
    %90 = vsyncpa [#allocation4], 1
    %91 = vsyncpa [#allocation9], 1
    %92 = vsyncpa [#allocation5], 1
    %93 = vsyncpa [#allocation6], 1

</llo_original>
